<compile_context>
chip_gen: v5e
topology: v5e:2x2
jax: 0.10.0
libtpu: 0.0.40
codegen_flags: <defaults>
</compile_context>

<pallas_src>
import math
import jax
import jax.numpy as jnp
from jax import lax
from jax.experimental import pallas as pl
from jax.experimental.pallas import tpu as pltpu

LANE = 128
SUBLANE = 8
# 2048 rows x 128 lanes x 4 B = 1 MiB per input tile.
TARGET_TILE_ROWS = 2048


def _make_sqdiff_partial_kernel(tile_rows, rows_total, needs_mask):
    """Build a kernel writing the (8, 128) partial sum of (a - b)^2 for one tile."""

    def kernel(a_ref, b_ref, part_ref):
        a = a_ref[...].astype(jnp.float32)
        b = b_ref[...].astype(jnp.float32)
        d = a - b
        if needs_mask:
            # Last grid step may read past the array end; zero out-of-bounds rows.
            k = pl.program_id(0)
            valid = rows_total - k * tile_rows
            row_idx = lax.broadcasted_iota(jnp.int32, (tile_rows, LANE), 0)
            d = jnp.where(row_idx < valid, d, 0.0)
        sq = d * d
        # Pure-VPU add tree down to one (8, 128) vreg; cross-lane work deferred to
        # the tiny wrapper-side jnp.sum over all partials.
        part = jnp.sum(sq.reshape(tile_rows // SUBLANE, SUBLANE, LANE), axis=0)
        part_ref[...] = part.reshape(1, SUBLANE, LANE)

    return kernel


def _sum_sq_diff_pallas(a, b):
    """sum((a - b)**2) over all elements as an f32 scalar (streaming Pallas reduce)."""
    a = a.reshape(-1)
    b = b.reshape(-1)
    n = a.shape[0]

    # Lane alignment. NCHW float32 activations are essentially always a multiple of
    # 128 elements, so this (full-copy) pad is normally never taken. Zero pads of
    # both operands contribute 0 to the sum.
    rem = n % LANE
    if rem:
        pad = LANE - rem
        a = jnp.pad(a, (0, pad))
        b = jnp.pad(b, (0, pad))
    rows = a.shape[0] // LANE
    a2 = a.reshape(rows, LANE)
    b2 = b.reshape(rows, LANE)

    if rows <= TARGET_TILE_ROWS:
        # Single block: round rows up to the sublane tile (array is < ~1 MiB here,
        # so the pad copy is negligible).
        tile_rows = -(-rows // SUBLANE) * SUBLANE
        if tile_rows != rows:
            a2 = jnp.pad(a2, ((0, tile_rows - rows), (0, 0)))
            b2 = jnp.pad(b2, ((0, tile_rows - rows), (0, 0)))
            rows = tile_rows
        num_tiles = 1
        needs_mask = False
    else:
        tile_rows = TARGET_TILE_ROWS
        num_tiles = pl.cdiv(rows, tile_rows)
        # Ragged row tail handled by the in-kernel mask (no big HBM pad copy).
        needs_mask = (rows % tile_rows) != 0

    kernel = _make_sqdiff_partial_kernel(tile_rows, rows, needs_mask)
    partials = pl.pallas_call(
        kernel,
        out_shape=jax.ShapeDtypeStruct((num_tiles, SUBLANE, LANE), jnp.float32),
        grid_spec=pltpu.PrefetchScalarGridSpec(
            num_scalar_prefetch=0,
            grid=(num_tiles,),
            in_specs=[
                pl.BlockSpec((tile_rows, LANE), lambda k: (k, 0)),
                pl.BlockSpec((tile_rows, LANE), lambda k: (k, 0)),
            ],
            out_specs=pl.BlockSpec((1, SUBLANE, LANE), lambda k: (k, 0, 0)),
        ),
        compiler_params=pltpu.CompilerParams(
            # Independent partial sums: shards across both TensorCores on v7x,
            # neutral on single-TC v5e / v6e.
            dimension_semantics=("parallel",),
        ),
    )(a2, b2)
    # Tiny cross-tile reduction of lane-dense partials.
    return jnp.sum(partials)


def constrained_ae_loss(net_in, x_hat, z, z_rec, beta=0.0, grad_pen_weight=0.0):
    """Mirrors ConstrainedAELoss.forward(net_in, net_out, anomaly_score=False).

    Returns (loss, total_loss_mean, loss_z_mean, embedding_loss), matching
    (loss.mean(), total_loss.mean().item(), loss_z.mean().item(), embedding_loss).
    """
    n_x = net_in.size

    # Hot path: global mean of (net_in - x_hat)^2 via the Pallas streaming reduce.
    sdiff_x = _sum_sq_diff_pallas(net_in, x_hat)
    recon_mean = sdiff_x / jnp.float32(n_x)

    # z / z_rec are tiny ([B, Z]); keep these means in plain jnp (a dedicated kernel
    # launch would cost far more than the work itself).
    z32 = z.astype(jnp.float32)
    zr32 = z_rec.astype(jnp.float32)
    embedding_loss = jnp.float32(beta) * jnp.mean(z32 * z32)
    loss_z_mean = jnp.mean((z32 - zr32) ** 2)

    # TODO(synk): grad_pen_loss requires autograd of mean(x_hat^2) w.r.t. z through
    # the external network graph, which the loss module alone cannot see; with the
    # default grad_pen_weight=0 the penalty is exactly 0 (nonzero weights are not
    # supported here).
    grad_penalty = jnp.float32(0.0) * jnp.float32(grad_pen_weight)

    # total_loss = recon_loss + embedding_loss + grad_penalty (scalars broadcast over
    # the elementwise recon_loss), hence total_loss.mean() is:
    total_loss_mean = recon_mean + embedding_loss + grad_penalty
    loss = total_loss_mean + loss_z_mean
    return loss, total_loss_mean, loss_z_mean, embedding_loss


if __name__ == "__main__":
    key = jax.random.PRNGKey(0)
    k1, k2, k3, k4 = jax.random.split(key, 4)

    B, C, H, W = 2, 4, 16, 16
    Z = 32

    net_in = jax.random.normal(k1, (B, C, H, W), dtype=jnp.float32)
    x_hat = jax.random.normal(k2, (B, C, H, W), dtype=jnp.float32)
    z = jax.random.normal(k3, (B, Z), dtype=jnp.float32)
    z_rec = jax.random.normal(k4, (B, Z), dtype=jnp.float32)

    beta = 0.1
    grad_pen_weight = 0.0

    loss, total_mean, loss_z_mean, emb_loss = constrained_ae_loss(
        net_in, x_hat, z, z_rec, beta=beta, grad_pen_weight=grad_pen_weight
    )
    jax.block_until_ready((loss, total_mean, loss_z_mean, emb_loss))

    # Reference check in plain JAX.
    recon_ref = jnp.mean((net_in - x_hat) ** 2)
    emb_ref = beta * jnp.mean(z ** 2)
    loss_z_ref = jnp.mean((z - z_rec) ** 2)
    loss_ref = recon_ref + emb_ref + loss_z_ref
    assert math.isclose(float(loss), float(loss_ref), rel_tol=1e-5, abs_tol=1e-5)
    assert math.isclose(float(total_mean), float(recon_ref + emb_ref), rel_tol=1e-5, abs_tol=1e-5)
    assert math.isclose(float(loss_z_mean), float(loss_z_ref), rel_tol=1e-5, abs_tol=1e-5)
    assert math.isclose(float(emb_loss), float(emb_ref), rel_tol=1e-5, abs_tol=1e-5)

    print("KERNEL_OK")
</pallas_src>

<mosaic_0001>
module attributes {stable_mosaic.version = 11 : i64} {
  func.func @kernel(%arg0: i32, %arg1: memref<16x128xf32, #tpu.memory_space<vmem>>, %arg2: memref<16x128xf32, #tpu.memory_space<vmem>>, %arg3: memref<1x8x128xf32, #tpu.memory_space<vmem>>) attributes {dimension_semantics = [#tpu.dimension_semantics<parallel>], iteration_bounds = array<i64: 1>, scalar_prefetch = 0 : i64, scratch_operands = 0 : i64, tpu.core_type = #tpu.core_type<tc>, window_params = [{transform_indices = @transform_0, window_bounds = array<i64: 16, 128>}, {transform_indices = @transform_1, window_bounds = array<i64: 16, 128>}, {transform_indices = @transform_2, window_bounds = array<i64: 1, 8, 128>}]} {
    %c0 = arith.constant 0 : index
    %c0_0 = arith.constant 0 : index
    %0 = vector.load %arg1[%c0, %c0_0] : memref<16x128xf32, #tpu.memory_space<vmem>>, vector<16x128xf32>
    %c0_1 = arith.constant 0 : index
    %c0_2 = arith.constant 0 : index
    %1 = vector.load %arg2[%c0_1, %c0_2] : memref<16x128xf32, #tpu.memory_space<vmem>>, vector<16x128xf32>
    %2 = arith.subf %0, %1 : vector<16x128xf32>
    %3 = arith.mulf %2, %2 : vector<16x128xf32>
    %4 = vector.shape_cast %3 : vector<16x128xf32> to vector<2x8x128xf32>
    %cst = arith.constant dense<0.000000e+00> : vector<8x128xf32>
    %5 = vector.multi_reduction <add>, %4, %cst [0] : vector<2x8x128xf32> to vector<8x128xf32>
    %6 = vector.shape_cast %5 : vector<8x128xf32> to vector<1x8x128xf32>
    %c0_3 = arith.constant 0 : index
    %c0_4 = arith.constant 0 : index
    %c0_5 = arith.constant 0 : index
    %7 = vector.load %arg3[%c0_3, %c0_4, %c0_5] : memref<1x8x128xf32, #tpu.memory_space<vmem>>, vector<1x8x128xf32>
    tpu.vector_store %arg3[%c0_3, %c0_4, %c0_5], %6 {strides = array<i32>} : memref<1x8x128xf32, #tpu.memory_space<vmem>>, vector<1x8x128xf32>,
    return
  }
  func.func @transform_0(%arg0: i32) -> (i32, i32) {
    %c0_i32 = arith.constant 0 : i32
    %c0_i32_0 = arith.constant 0 : i32
    return %arg0, %c0_i32 : i32, i32
  }
  func.func @transform_1(%arg0: i32) -> (i32, i32) {
    %c0_i32 = arith.constant 0 : i32
    %c0_i32_0 = arith.constant 0 : i32
    return %arg0, %c0_i32 : i32, i32
  }
  func.func @transform_2(%arg0: i32) -> (i32, i32, i32) {
    %c0_i32 = arith.constant 0 : i32
    %c0_i32_0 = arith.constant 0 : i32
    %c0_i32_1 = arith.constant 0 : i32
    return %arg0, %c0_i32, %c0_i32_0 : i32, i32, i32
  }
}

</mosaic_0001>

<llo_original>
// kernel: tpu_custom_call.1
$region0: #{tpu_custom_call.1}
  #allocation0 [shape = 'u32[]', space=smem, size = 0x4, offset = 0x4, fixed_abs, tag = 'smem constant byte address 0x4 - core index']
  #allocation1 [shape = 'u32[72,128]{1,0:T(1,128)}', space=vmem, size = 0x9000, scoped, tag = 'internal scratch']
  %s0 = inlined_call_operand.hbm [shape: f32[16,128], index: 0, kind: input, shape index: {}]
  %s1 = inlined_call_operand.hbm [shape: f32[16,128], index: 1, kind: input, shape index: {}]
  %s2 = inlined_call_operand.hbm [shape: f32[1,8,128], index: 2, kind: output, shape index: {}]
  %s3 = sld [smem:[#allocation0]]
  $region26: #{tpu_custom_call.1} parent=0
    _
  %s5 = ssub.s32 1, %s3
  %s6 = scalar_select 0, %s5, %s3
  $region1: #{tpu_custom_call.1} parent=0
    #allocation2 [shape = 'u8[8192]{0}', space=vmem, size = 0x2000, scoped, tag = 'input window, operand 0, single buffered']
    #allocation3 [shape = 's32[1]{0}', space=sflag, size = 0x4, scoped, tag = 'scoped memory for tpu_custom_call.1']
    #allocation4 [shape = 's32[1]{0}', space=sflag, size = 0x4, scoped, tag = 'scoped memory for tpu_custom_call.1']
    #allocation5 [shape = 'u8[8192]{0}', space=vmem, size = 0x2000, scoped, tag = 'input window, operand 1, single buffered']
    #allocation6 [shape = 's32[1]{0}', space=sflag, size = 0x4, scoped, tag = 'scoped memory for tpu_custom_call.1']
    #allocation7 [shape = 'u8[4096]{0}', space=vmem, size = 0x1000, scoped, tag = 'output window, operand 0, single buffered']
    %7 = vsyncpa [#allocation3], 0
    %8 = vsyncpa [#allocation6], 0
    %9 = vsyncpa [#allocation4], 0
    // Predicated region
    $region2: #{tpu_custom_call.1} parent=1 // pred_check
      _
    $region3: #{tpu_custom_call.1} parent=1 // pred_check_branch
      %11 = sbr.rel (0) target = $region5
    $region4: #{tpu_custom_call.1} parent=1 // pred_region
      %13 = vsyncadd [#allocation3], 0
      %s14 = sshll.u32 %s0, 4
      %s15 = int_to_ptr.hbm [resolvable:$true] %s14
      %s16 = sshll.u32 [#allocation2], 4
      %s17 = int_to_ptr.vmem [resolvable:$true] %s16
      %22 = dma.hbm_to_vmem [thread:$0]  %s15, 256, %s17, [#allocation3], 128, 128, 8
    $region5: #{tpu_custom_call.1} parent=1 // pred_fallthru
      _
    // Predicated region
    $region6: #{tpu_custom_call.1} parent=1 // pred_check
      _
    $region7: #{tpu_custom_call.1} parent=1 // pred_check_branch
      %24 = sbr.rel (0) target = $region9
    $region8: #{tpu_custom_call.1} parent=1 // pred_region
      %26 = vsyncadd [#allocation6], 0
      %s27 = sshll.u32 %s1, 4
      %s28 = int_to_ptr.hbm [resolvable:$true] %s27
      %s29 = sshll.u32 [#allocation5], 4
      %s30 = int_to_ptr.vmem [resolvable:$true] %s29
      %35 = dma.hbm_to_vmem [thread:$0]  %s28, 256, %s30, [#allocation6], 128, 128, 8
    $region9: #{tpu_custom_call.1} parent=1 // pred_fallthru
      _
    // Predicated region
    $region10: #{tpu_custom_call.1} parent=1 // pred_check
      _
    $region11: #{tpu_custom_call.1} parent=1 // pred_check_branch
      %37 = sbr.rel (0) target = $region13
    $region12: #{tpu_custom_call.1} parent=1 // pred_region
      %39 = dma.done [#allocation3], 256
    $region13: #{tpu_custom_call.1} parent=1 // pred_fallthru
      _
    // Predicated region
    $region14: #{tpu_custom_call.1} parent=1 // pred_check
      _
    $region15: #{tpu_custom_call.1} parent=1 // pred_check_branch
      %41 = sbr.rel (0) target = $region17
    $region16: #{tpu_custom_call.1} parent=1 // pred_region
      %43 = dma.done [#allocation6], 256
    $region17: #{tpu_custom_call.1} parent=1 // pred_fallthru
      _
    %v44 = vld [vmem:[#allocation2] sm:$0xff]
    %v45 = vld [vmem:[#allocation2 + $0x8] sm:$0xff]
    %v46 = vld [vmem:[#allocation5] sm:$0xff]
    %v47 = vld [vmem:[#allocation5 + $0x8] sm:$0xff]
    %v48 = vsub.f32 %v44, %v46
    %v49 = vsub.f32 %v45, %v47
    %v50 = vmul.f32 %v48, %v48
    %v51 = vmul.f32 %v49, %v49
    %v52 = vadd.f32 %v50, %v51
    %53 = vst [vmem:[#allocation7] sm:$0xff] %v52
    // Predicated region
    $region18: #{tpu_custom_call.1} parent=1 // pred_check
      _
    $region19: #{tpu_custom_call.1} parent=1 // pred_check_branch
      %55 = sbr.rel (0) target = $region21
    $region20: #{tpu_custom_call.1} parent=1 // pred_region
      %57 = vsyncadd [#allocation4], 0
      %s59 = sshll.u32 [#allocation7], 4
      %s60 = int_to_ptr.vmem [resolvable:$true] %s59
      %s61 = sshll.u32 %s2, 4
      %s62 = int_to_ptr.hbm [resolvable:$true] %s61
      %64 = dma.vmem_to_hbm [thread:$0]  %s60, 128, %s62, [#allocation4]
    $region21: #{tpu_custom_call.1} parent=1 // pred_fallthru
      _
    // Predicated region
    $region22: #{tpu_custom_call.1} parent=1 // pred_check
      _
    $region23: #{tpu_custom_call.1} parent=1 // pred_check_branch
      %66 = sbr.rel (0) target = $region25
    $region24: #{tpu_custom_call.1} parent=1 // pred_region
      %68 = dma.done [#allocation4], 128
    $region25: #{tpu_custom_call.1} parent=1 // pred_fallthru
      _
    %69 = vsyncpa [#allocation3], 1
    %70 = vsyncpa [#allocation6], 1
    %71 = vsyncpa [#allocation4], 1

</llo_original>
